<compile_context>
chip_gen: v7x
topology: tpu7x:2x2x1
jax: 0.10.0
libtpu: 0.0.40
codegen_flags: <defaults>
</compile_context>

<pallas_src>
import jax
import jax.numpy as jnp
from jax.experimental import pallas as pl
from jax.experimental.pallas import tpu as pltpu

LANE = 128
_MiB = 1024 * 1024


def _round_up(v: int, m: int) -> int:
    return (v + m - 1) // m * m


def _make_kernel(*, residual: bool, extra_x: bool, compute_dtype):
    """Grid = (batch tiles, output-feature tiles, reduction tiles)."""

    def kernel(*refs):
        if extra_x:
            x_ref, w_ref, b_ref, alpha_ref, xres_ref, o_ref, acc_ref = refs
        else:
            x_ref, w_ref, b_ref, alpha_ref, o_ref, acc_ref = refs
            xres_ref = x_ref  # single feature block: matmul x tile == residual x tile

        k = pl.program_id(2)

        @pl.when(k == 0)
        def _zero():
            acc_ref[...] = jnp.zeros_like(acc_ref)

        # Cast x to the MXU dtype *inside* the kernel (free VPU op): no extra HBM
        # pass over x in the wrapper, and the residual keeps full-precision x.
        acc_ref[...] += jnp.dot(
            x_ref[...].astype(compute_dtype),
            w_ref[...],
            preferred_element_type=jnp.float32,
        )

        @pl.when(k == pl.num_programs(2) - 1)
        def _finalize():
            y = acc_ref[...] + b_ref[...]
            alpha = alpha_ref[0]                          # scalar PReLU slope (SMEM)
            y = jnp.where(y >= 0.0, y, alpha * y)         # PReLU in f32
            if residual:                                  # static: input_dim == output_dim
                y = y + xres_ref[...].astype(jnp.float32)  # f32 residual add
            o_ref[...] = y.astype(o_ref.dtype)

    return kernel


def residual_block(x, w, b, alpha, *, compute_dtype=jnp.bfloat16,
                   max_feature_tile=2048, target_step_bytes=4 * _MiB,
                   slice_output=True):
    """x: (B, D_in); w: (D_in, D_out) (transposed vs. PyTorch); b: (D_out,); alpha: (1,)."""
    B, d_in = x.shape
    d_out = w.shape[1]
    residual = (d_in == d_out)          # gate on the *original* dims, not padded ones
    out_dtype = x.dtype

    x_bytes = jnp.dtype(x.dtype).itemsize
    w_bytes = jnp.dtype(compute_dtype).itemsize
    out_bytes = jnp.dtype(out_dtype).itemsize

    # ---- feature-dim tiling: keep the bf16 W tile / f32 accumulator bounded ----
    def _feat_tile(d):
        dp = _round_up(d, LANE)
        return dp if dp <= max_feature_tile else max_feature_tile

    tile_k = _feat_tile(d_in)
    tile_n = _feat_tile(d_out)
    d_in_p = _round_up(d_in, tile_k)
    d_out_p = _round_up(d_out, tile_n)
    k_tiles = d_in_p // tile_k
    n_tiles = d_out_p // tile_n

    reuse_x = residual and k_tiles == 1 and n_tiles == 1
    extra_x = residual and not reuse_x        # separate residual operand when W is tiled
    w_const = (k_tiles == 1 and n_tiles == 1)  # W block index constant -> single buffer
    b_const = (n_tiles == 1)
    w_bufs = 1 if w_const else 2

    # ---- VMEM cap: generation-aware (~85% of physical VMEM) ----
    try:
        info = pltpu.get_tpu_info()
        vmem_cap = int(getattr(info, "vmem_capacity_bytes", 128 * _MiB))
    except Exception:
        vmem_cap = 128 * _MiB
    vmem_cap_limit = int(vmem_cap * 0.85)

    # ---- batch tiling: size by HBM bytes per grid step, fit VMEM, feed both TCs ----
    row_bytes = d_in_p * x_bytes + d_out_p * out_bytes \
        + (d_out_p * x_bytes if residual else 0)
    tile_m = _round_up(max(target_step_bytes // max(row_bytes, 1), 256), 256)
    tile_m = min(tile_m, _round_up(B, 8))
    if pl.cdiv(B, tile_m) < 2 and B > 8:
        # >=2 grid steps so a 2-TC chip (v7x) shards the batch axis.
        tile_m = _round_up(pl.cdiv(B, 2), 8)

    def _footprint(tm):
        f = 2 * tm * tile_k * x_bytes                 # x tile (double-buffered, orig dtype)
        f += w_bufs * tile_k * tile_n * w_bytes       # W tile (single-buffered if constant)
        f += (1 if b_const else 2) * tile_n * 4       # bias row
        f += 2 * tm * tile_n * out_bytes              # output tile
        if extra_x:
            f += 2 * tm * tile_n * x_bytes            # residual x tile
        f += tm * tile_n * 4                          # f32 accumulator scratch
        return f

    headroom = 8 * _MiB
    while _footprint(tile_m) > vmem_cap_limit - headroom and tile_m > 8:
        tile_m = max(8, _round_up(tile_m // 2, 8))

    vmem_limit = int(min(max(_footprint(tile_m) + headroom, 32 * _MiB), vmem_cap_limit))

    grid = (pl.cdiv(B, tile_m), n_tiles, k_tiles)

    # ---- operand prep (no wrapper cast of x; pad only when lane alignment needs it) ----
    xp = x if d_in_p == d_in else jnp.pad(x, ((0, 0), (0, d_in_p - d_in)))
    if d_in_p != d_in or d_out_p != d_out:
        wp = jnp.pad(w, ((0, d_in_p - d_in), (0, d_out_p - d_out))).astype(compute_dtype)
    else:
        wp = w.astype(compute_dtype)
    bp = (jnp.pad(b, (0, d_out_p - d_out)) if d_out_p != d_out else b)
    bp = bp.astype(jnp.float32).reshape(1, d_out_p)
    # TODO(synk): per-channel PReLU (num_parameters=d_out) would need alpha as a
    # (1, d_out_p) VMEM row instead of an SMEM scalar.
    alpha = jnp.asarray(alpha, jnp.float32).reshape(-1)[:1]
    # TODO(synk): optional fp8(e4m3) W path for v7x with per-channel scale in the epilogue.

    kernel = _make_kernel(residual=residual, extra_x=extra_x, compute_dtype=compute_dtype)
    operands = [xp, wp, bp, alpha] + ([xp] if extra_x else [])

    def _spec(shape, imap, single_buffer):
        if single_buffer:
            return pl.BlockSpec(shape, imap, pipeline_mode=pl.Buffered(1))
        return pl.BlockSpec(shape, imap)

    def _run(use_single_buffer_hint):
        in_specs = [
            pl.BlockSpec((tile_m, tile_k), lambda i, j, k: (i, k)),        # x (matmul operand)
            _spec((tile_k, tile_n), lambda i, j, k: (k, j),
                  w_const and use_single_buffer_hint),                      # W
            _spec((1, tile_n), lambda i, j, k: (0, j),
                  b_const and use_single_buffer_hint),                      # bias row
            pl.BlockSpec(memory_space=pltpu.SMEM),                          # PReLU alpha scalar
        ]
        if extra_x:
            in_specs.append(pl.BlockSpec((tile_m, tile_n), lambda i, j, k: (i, j)))

        return pl.pallas_call(
            kernel,
            out_shape=jax.ShapeDtypeStruct((B, d_out_p), out_dtype),
            grid_spec=pltpu.PrefetchScalarGridSpec(
                num_scalar_prefetch=0,
                grid=grid,
                in_specs=in_specs,
                out_specs=pl.BlockSpec((tile_m, tile_n), lambda i, j, k: (i, j)),
                scratch_shapes=[pltpu.VMEM((tile_m, tile_n), jnp.float32)],
            ),
            compiler_params=pltpu.CompilerParams(
                dimension_semantics=("parallel", "parallel", "arbitrary"),
                vmem_limit_bytes=vmem_limit,
            ),
        )(*operands)

    try:
        out = _run(True)
    except Exception:
        if not (w_const or b_const):
            raise
        out = _run(False)   # fall back if pl.Buffered(1) is unsupported on this jax version

    if slice_output and d_out_p != d_out:
        # TODO(synk): let downstream consumers take the 128-padded slab to skip this HBM pass.
        out = out[:, :d_out]
    return out


def residual_block_ref(x, w, b, alpha, compute_dtype=jnp.bfloat16):
    """Pure-JAX reference matching the kernel's bf16-matmul / f32-epilogue math."""
    y = jnp.dot(x.astype(compute_dtype), w.astype(compute_dtype),
                preferred_element_type=jnp.float32) + b
    y = jnp.where(y >= 0.0, y, alpha[0] * y)
    if x.shape[-1] == w.shape[1]:
        y = y + x.astype(jnp.float32)          # full-precision residual, like PyTorch
    return y.astype(x.dtype)


if __name__ == "__main__":
    key = jax.random.PRNGKey(0)
    kx1, kw1, kb1, kx2, kw2, kb2, kx3, kw3, kb3 = jax.random.split(key, 9)

    def make_params(kw_, kb_, d_in, d_out):
        bound = 1.0 / (d_in ** 0.5)      # nn.Linear default uniform init range
        w_ = jax.random.uniform(kw_, (d_in, d_out), jnp.float32, -bound, bound)
        b_ = jax.random.uniform(kb_, (d_out,), jnp.float32, -bound, bound)
        return w_, b_

    alpha = jnp.array([0.25], dtype=jnp.float32)    # nn.PReLU() default init

    # Case 1: input_dim == output_dim -> residual connection active.
    B, D = 16, 32
    x1 = jax.random.normal(kx1, (B, D), jnp.float32)
    w1, b1 = make_params(kw1, kb1, D, D)
    o1 = jax.block_until_ready(residual_block(x1, w1, b1, alpha))
    r1 = residual_block_ref(x1, w1, b1, alpha)
    assert o1.shape == (B, D)
    assert jnp.allclose(o1, r1, atol=1e-3, rtol=1e-3), "case 1 mismatch vs reference"

    # Case 2: input_dim != output_dim -> no residual connection.
    x2 = jax.random.normal(kx2, (B, 32), jnp.float32)
    w2, b2 = make_params(kw2, kb2, 32, 48)
    o2 = jax.block_until_ready(residual_block(x2, w2, b2, alpha))
    r2 = residual_block_ref(x2, w2, b2, alpha)
    assert o2.shape == (B, 48)
    assert jnp.allclose(o2, r2, atol=1e-3, rtol=1e-3), "case 2 mismatch vs reference"

    # Case 3: force the N/K-tiled (accumulator) path at a small size.
    D3 = 256
    x3 = jax.random.normal(kx3, (B, D3), jnp.float32)
    w3, b3 = make_params(kw3, kb3, D3, D3)
    o3 = jax.block_until_ready(residual_block(x3, w3, b3, alpha, max_feature_tile=128))
    r3 = residual_block_ref(x3, w3, b3, alpha)
    assert o3.shape == (B, D3)
    assert jnp.allclose(o3, r3, atol=1e-3, rtol=1e-3), "case 3 mismatch vs reference"

    print("KERNEL_OK")
</pallas_src>

<mosaic_0001>
module attributes {stable_mosaic.version = 11 : i64} {
  func.func @kernel(%arg0: i32, %arg1: i32, %arg2: i32, %arg3: memref<8x128xf32, #tpu.memory_space<vmem>>, %arg4: memref<128x128xbf16, #tpu.memory_space<vmem>>, %arg5: memref<1x128xf32, #tpu.memory_space<vmem>>, %arg6: memref<1xf32, #tpu.memory_space<smem>>, %arg7: memref<8x128xf32, #tpu.memory_space<vmem>>, %arg8: memref<8x128xf32, #tpu.memory_space<vmem>>) attributes {dimension_semantics = [#tpu.dimension_semantics<parallel>, #tpu.dimension_semantics<parallel>, #tpu.dimension_semantics<arbitrary>], iteration_bounds = array<i64: 2, 1, 1>, scalar_prefetch = 0 : i64, scratch_operands = 1 : i64, tpu.core_type = #tpu.core_type<tc>, window_params = [{transform_indices = @transform_0, window_bounds = array<i64: 8, 128>}, {pipeline_mode = #tpu.pipeline_mode<synchronous>, transform_indices = @transform_1, window_bounds = array<i64: 128, 128>}, {pipeline_mode = #tpu.pipeline_mode<synchronous>, transform_indices = @transform_2, window_bounds = array<i64: 1, 128>}, {transform_indices = @transform_3, window_bounds = array<i64: 1>}, {transform_indices = @transform_4, window_bounds = array<i64: 8, 128>}]} {
    %c0_i32 = arith.constant 0 : i32
    %0 = arith.cmpi eq, %arg2, %c0_i32 : i32
    %1 = arith.extui %0 : i1 to i32
    %c0_i32_0 = arith.constant 0 : i32
    %2 = arith.cmpi ne, %1, %c0_i32_0 : i32
    scf.if %2 {
      %cst_10 = arith.constant 0.000000e+00 : f32
      %13 = vector.broadcast %cst_10 : f32 to vector<8x128xf32>
      %c0_11 = arith.constant 0 : index
      %c0_12 = arith.constant 0 : index
      %14 = vector.load %arg8[%c0_11, %c0_12] : memref<8x128xf32, #tpu.memory_space<vmem>>, vector<8x128xf32>
      tpu.vector_store %arg8[%c0_11, %c0_12], %13 {strides = array<i32>} : memref<8x128xf32, #tpu.memory_space<vmem>>, vector<8x128xf32>,
    } else {
    }
    %c0 = arith.constant 0 : index
    %c0_1 = arith.constant 0 : index
    %3 = vector.load %arg8[%c0, %c0_1] : memref<8x128xf32, #tpu.memory_space<vmem>>, vector<8x128xf32>
    %c0_2 = arith.constant 0 : index
    %c0_3 = arith.constant 0 : index
    %4 = vector.load %arg3[%c0_2, %c0_3] : memref<8x128xf32, #tpu.memory_space<vmem>>, vector<8x128xf32>
    %5 = arith.truncf %4 : vector<8x128xf32> to vector<8x128xbf16>
    %c0_4 = arith.constant 0 : index
    %c0_5 = arith.constant 0 : index
    %6 = vector.load %arg4[%c0_4, %c0_5] : memref<128x128xbf16, #tpu.memory_space<vmem>>, vector<128x128xbf16>
    %cst = arith.constant dense<0.000000e+00> : vector<8x128xf32>
    %7 = tpu.matmul %5, %6, %cst {dimension_numbers = #tpu.dot_dimension_numbers<[1], [0], [0], [1], [0, 0, 1, 1], [], []>} : vector<8x128xbf16>, vector<128x128xbf16>, vector<8x128xf32> -> vector<8x128xf32>
    %8 = arith.addf %3, %7 : vector<8x128xf32>
    %c0_6 = arith.constant 0 : index
    %c0_7 = arith.constant 0 : index
    %9 = vector.load %arg8[%c0_6, %c0_7] : memref<8x128xf32, #tpu.memory_space<vmem>>, vector<8x128xf32>
    tpu.vector_store %arg8[%c0_6, %c0_7], %8 {strides = array<i32>} : memref<8x128xf32, #tpu.memory_space<vmem>>, vector<8x128xf32>,
    %c0_i32_8 = arith.constant 0 : i32
    %10 = arith.cmpi eq, %arg2, %c0_i32_8 : i32
    %11 = arith.extui %10 : i1 to i32
    %c0_i32_9 = arith.constant 0 : i32
    %12 = arith.cmpi ne, %11, %c0_i32_9 : i32
    scf.if %12 {
      %c0_10 = arith.constant 0 : index
      %c0_11 = arith.constant 0 : index
      %13 = vector.load %arg8[%c0_10, %c0_11] : memref<8x128xf32, #tpu.memory_space<vmem>>, vector<8x128xf32>
      %c0_12 = arith.constant 0 : index
      %c0_13 = arith.constant 0 : index
      %14 = vector.load %arg5[%c0_12, %c0_13] : memref<1x128xf32, #tpu.memory_space<vmem>>, vector<1x128xf32>
      %15 = vector.broadcast %14 : vector<1x128xf32> to vector<8x128xf32>
      %16 = arith.addf %13, %15 : vector<8x128xf32>
      %c0_14 = arith.constant 0 : index
      %17 = memref.load %arg6[%c0_14] : memref<1xf32, #tpu.memory_space<smem>>
      %cst_15 = arith.constant 0.000000e+00 : f32
      %18 = vector.broadcast %cst_15 : f32 to vector<8x128xf32>
      %19 = arith.cmpf oge, %16, %18 : vector<8x128xf32>
      %20 = vector.broadcast %17 : f32 to vector<8x128xf32>
      %21 = arith.mulf %20, %16 : vector<8x128xf32>
      %22 = arith.select %19, %16, %21 : vector<8x128xi1>, vector<8x128xf32>
      %c0_16 = arith.constant 0 : index
      %c0_17 = arith.constant 0 : index
      %23 = vector.load %arg3[%c0_16, %c0_17] : memref<8x128xf32, #tpu.memory_space<vmem>>, vector<8x128xf32>
      %24 = arith.addf %22, %23 : vector<8x128xf32>
      %c0_18 = arith.constant 0 : index
      %c0_19 = arith.constant 0 : index
      %25 = vector.load %arg7[%c0_18, %c0_19] : memref<8x128xf32, #tpu.memory_space<vmem>>, vector<8x128xf32>
      tpu.vector_store %arg7[%c0_18, %c0_19], %24 {strides = array<i32>} : memref<8x128xf32, #tpu.memory_space<vmem>>, vector<8x128xf32>,
    } else {
    }
    return
  }
  func.func @transform_0(%arg0: i32, %arg1: i32, %arg2: i32) -> (i32, i32) {
    %c0_i32 = arith.constant 0 : i32
    return %arg0, %arg2 : i32, i32
  }
  func.func @transform_1(%arg0: i32, %arg1: i32, %arg2: i32) -> (i32, i32) {
    %c0_i32 = arith.constant 0 : i32
    return %arg2, %arg1 : i32, i32
  }
  func.func @transform_2(%arg0: i32, %arg1: i32, %arg2: i32) -> (i32, i32) {
    %c0_i32 = arith.constant 0 : i32
    %c0_i32_0 = arith.constant 0 : i32
    return %c0_i32, %arg1 : i32, i32
  }
  func.func @transform_3(%arg0: i32, %arg1: i32, %arg2: i32) -> i32 {
    %c0_i32 = arith.constant 0 : i32
    %c0_i32_0 = arith.constant 0 : i32
    return %c0_i32 : i32
  }
  func.func @transform_4(%arg0: i32, %arg1: i32, %arg2: i32) -> (i32, i32) {
    %c0_i32 = arith.constant 0 : i32
    return %arg0, %arg1 : i32, i32
  }
}

module attributes {stable_mosaic.version = 11 : i64} {
  func.func @kernel(%arg0: i32, %arg1: i32, %arg2: i32, %arg3: memref<8x128xf32, #tpu.memory_space<vmem>>, %arg4: memref<128x128xbf16, #tpu.memory_space<vmem>>, %arg5: memref<1x128xf32, #tpu.memory_space<vmem>>, %arg6: memref<1xf32, #tpu.memory_space<smem>>, %arg7: memref<8x128xf32, #tpu.memory_space<vmem>>, %arg8: memref<8x128xf32, #tpu.memory_space<vmem>>) attributes {dimension_semantics = [#tpu.dimension_semantics<parallel>, #tpu.dimension_semantics<parallel>, #tpu.dimension_semantics<arbitrary>], iteration_bounds = array<i64: 2, 1, 1>, scalar_prefetch = 0 : i64, scratch_operands = 1 : i64, tpu.core_type = #tpu.core_type<tc>, window_params = [{transform_indices = @transform_0, window_bounds = array<i64: 8, 128>}, {transform_indices = @transform_1, window_bounds = array<i64: 128, 128>}, {transform_indices = @transform_2, window_bounds = array<i64: 1, 128>}, {transform_indices = @transform_3, window_bounds = array<i64: 1>}, {transform_indices = @transform_4, window_bounds = array<i64: 8, 128>}]} {
    %c0_i32 = arith.constant 0 : i32
    %0 = arith.cmpi eq, %arg2, %c0_i32 : i32
    %1 = arith.extui %0 : i1 to i32
    %c0_i32_0 = arith.constant 0 : i32
    %2 = arith.cmpi ne, %1, %c0_i32_0 : i32
    scf.if %2 {
      %cst_10 = arith.constant 0.000000e+00 : f32
      %13 = vector.broadcast %cst_10 : f32 to vector<8x128xf32>
      %c0_11 = arith.constant 0 : index
      %c0_12 = arith.constant 0 : index
      %14 = vector.load %arg8[%c0_11, %c0_12] : memref<8x128xf32, #tpu.memory_space<vmem>>, vector<8x128xf32>
      tpu.vector_store %arg8[%c0_11, %c0_12], %13 {strides = array<i32>} : memref<8x128xf32, #tpu.memory_space<vmem>>, vector<8x128xf32>,
    } else {
    }
    %c0 = arith.constant 0 : index
    %c0_1 = arith.constant 0 : index
    %3 = vector.load %arg8[%c0, %c0_1] : memref<8x128xf32, #tpu.memory_space<vmem>>, vector<8x128xf32>
    %c0_2 = arith.constant 0 : index
    %c0_3 = arith.constant 0 : index
    %4 = vector.load %arg3[%c0_2, %c0_3] : memref<8x128xf32, #tpu.memory_space<vmem>>, vector<8x128xf32>
    %5 = arith.truncf %4 : vector<8x128xf32> to vector<8x128xbf16>
    %c0_4 = arith.constant 0 : index
    %c0_5 = arith.constant 0 : index
    %6 = vector.load %arg4[%c0_4, %c0_5] : memref<128x128xbf16, #tpu.memory_space<vmem>>, vector<128x128xbf16>
    %cst = arith.constant dense<0.000000e+00> : vector<8x128xf32>
    %7 = tpu.matmul %5, %6, %cst {dimension_numbers = #tpu.dot_dimension_numbers<[1], [0], [0], [1], [0, 0, 1, 1], [], []>} : vector<8x128xbf16>, vector<128x128xbf16>, vector<8x128xf32> -> vector<8x128xf32>
    %8 = arith.addf %3, %7 : vector<8x128xf32>
    %c0_6 = arith.constant 0 : index
    %c0_7 = arith.constant 0 : index
    %9 = vector.load %arg8[%c0_6, %c0_7] : memref<8x128xf32, #tpu.memory_space<vmem>>, vector<8x128xf32>
    tpu.vector_store %arg8[%c0_6, %c0_7], %8 {strides = array<i32>} : memref<8x128xf32, #tpu.memory_space<vmem>>, vector<8x128xf32>,
    %c0_i32_8 = arith.constant 0 : i32
    %10 = arith.cmpi eq, %arg2, %c0_i32_8 : i32
    %11 = arith.extui %10 : i1 to i32
    %c0_i32_9 = arith.constant 0 : i32
    %12 = arith.cmpi ne, %11, %c0_i32_9 : i32
    scf.if %12 {
      %c0_10 = arith.constant 0 : index
      %c0_11 = arith.constant 0 : index
      %13 = vector.load %arg8[%c0_10, %c0_11] : memref<8x128xf32, #tpu.memory_space<vmem>>, vector<8x128xf32>
      %c0_12 = arith.constant 0 : index
      %c0_13 = arith.constant 0 : index
      %14 = vector.load %arg5[%c0_12, %c0_13] : memref<1x128xf32, #tpu.memory_space<vmem>>, vector<1x128xf32>
      %15 = vector.broadcast %14 : vector<1x128xf32> to vector<8x128xf32>
      %16 = arith.addf %13, %15 : vector<8x128xf32>
      %c0_14 = arith.constant 0 : index
      %17 = memref.load %arg6[%c0_14] : memref<1xf32, #tpu.memory_space<smem>>
      %cst_15 = arith.constant 0.000000e+00 : f32
      %18 = vector.broadcast %cst_15 : f32 to vector<8x128xf32>
      %19 = arith.cmpf oge, %16, %18 : vector<8x128xf32>
      %20 = vector.broadcast %17 : f32 to vector<8x128xf32>
      %21 = arith.mulf %20, %16 : vector<8x128xf32>
      %22 = arith.select %19, %16, %21 : vector<8x128xi1>, vector<8x128xf32>
      %c0_16 = arith.constant 0 : index
      %c0_17 = arith.constant 0 : index
      %23 = vector.load %arg3[%c0_16, %c0_17] : memref<8x128xf32, #tpu.memory_space<vmem>>, vector<8x128xf32>
      %24 = arith.addf %22, %23 : vector<8x128xf32>
      %c0_18 = arith.constant 0 : index
      %c0_19 = arith.constant 0 : index
      %25 = vector.load %arg7[%c0_18, %c0_19] : memref<8x128xf32, #tpu.memory_space<vmem>>, vector<8x128xf32>
      tpu.vector_store %arg7[%c0_18, %c0_19], %24 {strides = array<i32>} : memref<8x128xf32, #tpu.memory_space<vmem>>, vector<8x128xf32>,
    } else {
    }
    return
  }
  func.func @transform_0(%arg0: i32, %arg1: i32, %arg2: i32) -> (i32, i32) {
    %c0_i32 = arith.constant 0 : i32
    return %arg0, %arg2 : i32, i32
  }
  func.func @transform_1(%arg0: i32, %arg1: i32, %arg2: i32) -> (i32, i32) {
    %c0_i32 = arith.constant 0 : i32
    return %arg2, %arg1 : i32, i32
  }
  func.func @transform_2(%arg0: i32, %arg1: i32, %arg2: i32) -> (i32, i32) {
    %c0_i32 = arith.constant 0 : i32
    %c0_i32_0 = arith.constant 0 : i32
    return %c0_i32, %arg1 : i32, i32
  }
  func.func @transform_3(%arg0: i32, %arg1: i32, %arg2: i32) -> i32 {
    %c0_i32 = arith.constant 0 : i32
    %c0_i32_0 = arith.constant 0 : i32
    return %c0_i32 : i32
  }
  func.func @transform_4(%arg0: i32, %arg1: i32, %arg2: i32) -> (i32, i32) {
    %c0_i32 = arith.constant 0 : i32
    return %arg0, %arg1 : i32, i32
  }
}

</mosaic_0001>

<llo_original>
// kernel: tpu_custom_call.1
$region0: #{tpu_custom_call.1}
  #allocation0 [shape = 'u32[]', space=smem, size = 0x4, offset = 0x4, fixed_abs, tag = 'smem constant byte address 0x4 - core index']
  #allocation1 [shape = 'u32[144,128]{1,0:T(1,128)}', space=vmem, size = 0x12000, scoped, tag = 'internal scratch']
  #allocation2 [shape = 'f32[8,128]{1,0:T(8,128)}', space=vmem, size = 0x1000, scoped, tag = 'scratch operand']
  #allocation3 [shape = 'f32[1]{0:T(128)S(6)}', space=smem, size = 0x200, scoped, tag = 'scoped memory for tpu_custom_call.1']
  %s0 = inlined_call_operand.hbm [shape: f32[16,128], index: 0, kind: input, shape index: {}]
  %s1 = inlined_call_operand.hbm [shape: bf16[128,128], index: 1, kind: input, shape index: {}]
  %s2 = inlined_call_operand.vmem [shape: f32[1,128], index: 2, kind: input, shape index: {}]
  %s3 = inlined_call_operand.<no memory space> [shape: f32[1], index: 3, kind: input, shape index: {}]
  %s4 = inlined_call_operand.hbm [shape: f32[16,128], index: 4, kind: output, shape index: {}]
  %s5 = sld [smem:[#allocation0]]
  $region65: #{tpu_custom_call.1} parent=0
    _
  %s7 = ssub.s32 1, %s5
  %s8 = scalar_select 0, %s7, %s5
  %9 = sst [smem:[#allocation3]] %s3
  $region1: #{tpu_custom_call.1} parent=0
    #allocation4 [shape = 'u8[8192]{0}', space=vmem, size = 0x2000, scoped, tag = 'input window, operand 0']
    #allocation5 [shape = 's32[2]{0}', space=sflag, size = 0x8, scoped, tag = 'scoped memory for tpu_custom_call.1']
    #allocation6 [shape = 's32[2]{0}', space=sflag, size = 0x8, scoped, tag = 'scoped memory for tpu_custom_call.1']
    #allocation7 [shape = 'u8[32768]{0}', space=vmem, size = 0x8000, scoped, tag = 'input window, operand 1, single buffered']
    #allocation8 [shape = 's32[1]{0}', space=sflag, size = 0x4, scoped, tag = 'scoped memory for tpu_custom_call.1']
    #allocation9 [shape = 'u8[8192]{0}', space=vmem, size = 0x2000, scoped, tag = 'output window, operand 0']
    %10 = vsyncpa [#allocation5], 0
    %s11 = scalar_lea.sflag [#allocation5], 1
    %12 = vsyncpa %s11, 0
    %13 = vsyncpa [#allocation8], 0
    %14 = vsyncpa [#allocation6], 0
    %s15 = scalar_lea.sflag [#allocation6], 1
    %16 = vsyncpa %s15, 0
    loop: start=0, step=1, limit=4
    $region2: #{tpu_custom_call.1} parent=1 // loop_pre_header
      _
    $region3: #{tpu_custom_call.1} parent=1 // loop_header
      %s18 = sphi 0, %s22
      %p19 = scmp.ge.s32.totalorder %s18, 4
      %s25 = sphi 0, %s44
      %s26 = sphi 0, %s40
      %s27 = sphi 0, %s36
      %s28 = sphi 0, %s25
      %s29 = sphi 0, %s26
      %s30 = sphi 0, %s27
      %s31 = sphi 0, %s28
      %s32 = sphi 0, %s29
      %s33 = sphi 0, %s30
      %s49 = sphi 0, %s51
      %s52 = sphi 0, %s49
      %s53 = sphi 0, %s52
      %s69 = sphi 0, %s53
      %s77 = sphi 0, %s79
      %s80 = sphi 0, %s77
      %s81 = sphi 0, %s80
      %s97 = sphi 0, %s81
      %s103 = sphi 0, %s105
      %s106 = sphi 0, %s103
      %s107 = sphi 0, %s106
      %s123 = sphi 0, %s107
      %s127 = sphi 0, %s127
      %s129 = sphi 0, %s127
      %s130 = sphi 0, %s129
      %s144 = sphi 0, %s130
      %s152 = sphi 0, %s154
      %s155 = sphi 0, %s152
      %s156 = sphi 0, %s155
      %s172 = sphi 0, %s156
    $region4: #{tpu_custom_call.1} parent=1 // loop_header_branch
      %21 = sbr.rel (%p19) target = $region8
    $region5: #{tpu_custom_call.1} parent=1 // loop_body
      %s23 = ssub.s32 %s18, 1
      %s24 = ssub.s32 %s18, 2
      %s34 = sadd.s32 1, %s27
      %p35 = scmp.ge.s32.totalorder %s34, 1
      %s36 = scalar_select %p35, 0, %s34
      %s37 = sadd.s32 1, %s26
      %s38 = scalar_select %p35, %s37, %s26
      %p39 = scmp.ge.s32.totalorder %s38, 1
      %s40 = scalar_select %p39, 0, %s38
      %s41 = sadd.s32 1, %s25
      %s42 = scalar_select %p39, %s41, %s25
      %p43 = scmp.ge.s32.totalorder %s42, 2
      %s44 = scalar_select %p43, 0, %s42
      %s45 = ssub.s32 %s25, %s44
      %s46 = ssub.s32 %s27, %s36
      %s47 = sor.u32 %s45, %s46
      %p48 = scmp.eq.s32.totalorder %s47, 0
      %s50 = sadd.s32 %s49, 1
      %s51 = scalar_select %p48, %s49, %s50
      %p54 = pneg %p48
      %p55 = scmp.eq.s32.totalorder %s18, 1
      %p56 = por %p54, %p55
      %p57 = scmp.ne.s32.totalorder %s49, %s52
      %p58 = scmp.eq.s32.totalorder %s18, 0
      %p59 = por %p57, %p58
      %p60 = scmp.ne.s32.totalorder %s49, %s52
      %p61 = scmp.eq.s32.totalorder %s23, 1
      %p62 = por %p60, %p61
      %p63 = scmp.ne.s32.totalorder %s52, %s53
      %p64 = scmp.eq.s32.totalorder %s23, 0
      %p65 = por %p63, %p64
      %p66 = scmp.ne.s32.totalorder %s52, %s53
      %p67 = scmp.eq.s32.totalorder %s24, 1
      %p68 = por %p66, %p67
      %p70 = scmp.ne.s32.totalorder %s53, %s69
      %p71 = scmp.eq.s32.totalorder %s24, 0
      %p72 = por %p70, %p71
      %s73 = ssub.s32 %s27, %s36
      %s74 = ssub.s32 %s26, %s40
      %s75 = sor.u32 %s73, %s74
      %p76 = scmp.eq.s32.totalorder %s75, 0
      %s78 = sadd.s32 %s77, 1
      %s79 = scalar_select %p76, %s77, %s78
      %p82 = pneg %p76
      %p83 = scmp.eq.s32.totalorder %s18, 1
      %p84 = por %p82, %p83
      %p85 = scmp.ne.s32.totalorder %s77, %s80
      %p86 = scmp.eq.s32.totalorder %s18, 0
      %p87 = por %p85, %p86
      %p88 = scmp.ne.s32.totalorder %s77, %s80
      %p89 = scmp.eq.s32.totalorder %s23, 1
      %p90 = por %p88, %p89
      %p91 = scmp.ne.s32.totalorder %s80, %s81
      %p92 = scmp.eq.s32.totalorder %s23, 0
      %p93 = por %p91, %p92
      %p94 = scmp.ne.s32.totalorder %s80, %s81
      %p95 = scmp.eq.s32.totalorder %s24, 1
      %p96 = por %p94, %p95
      %p98 = scmp.ne.s32.totalorder %s81, %s97
      %p99 = scmp.eq.s32.totalorder %s24, 0
      %p100 = por %p98, %p99
      %s101 = ssub.s32 %s26, %s40
      %p102 = scmp.eq.s32.totalorder %s101, 0
      %s104 = sadd.s32 %s103, 1
      %s105 = scalar_select %p102, %s103, %s104
      %p108 = pneg %p102
      %p109 = scmp.eq.s32.totalorder %s18, 1
      %p110 = por %p108, %p109
      %p111 = scmp.ne.s32.totalorder %s103, %s106
      %p112 = scmp.eq.s32.totalorder %s18, 0
      %p113 = por %p111, %p112
      %p114 = scmp.ne.s32.totalorder %s103, %s106
      %p115 = scmp.eq.s32.totalorder %s23, 1
      %p116 = por %p114, %p115
      %p117 = scmp.ne.s32.totalorder %s106, %s107
      %p118 = scmp.eq.s32.totalorder %s23, 0
      %p119 = por %p117, %p118
      %p120 = scmp.ne.s32.totalorder %s106, %s107
      %p121 = scmp.eq.s32.totalorder %s24, 1
      %p122 = por %p120, %p121
      %p124 = scmp.ne.s32.totalorder %s107, %s123
      %p125 = scmp.eq.s32.totalorder %s24, 0
      %p126 = por %p124, %p125
      %s128 = sadd.s32 %s127, 1
      %p131 = scmp.eq.s32.totalorder %s18, 1
      %p132 = scmp.ne.s32.totalorder %s127, %s129
      %p133 = scmp.eq.s32.totalorder %s18, 0
      %p134 = por %p132, %p133
      %p135 = scmp.ne.s32.totalorder %s127, %s129
      %p136 = scmp.eq.s32.totalorder %s23, 1
      %p137 = por %p135, %p136
      %p138 = scmp.ne.s32.totalorder %s129, %s130
      %p139 = scmp.eq.s32.totalorder %s23, 0
      %p140 = por %p138, %p139
      %p141 = scmp.ne.s32.totalorder %s129, %s130
      %p142 = scmp.eq.s32.totalorder %s24, 1
      %p143 = por %p141, %p142
      %p145 = scmp.ne.s32.totalorder %s130, %s144
      %p146 = scmp.eq.s32.totalorder %s24, 0
      %p147 = por %p145, %p146
      %s148 = ssub.s32 %s25, %s44
      %s149 = ssub.s32 %s26, %s40
      %s150 = sor.u32 %s148, %s149
      %p151 = scmp.eq.s32.totalorder %s150, 0
      %s153 = sadd.s32 %s152, 1
      %s154 = scalar_select %p151, %s152, %s153
      %p157 = pneg %p151
      %p158 = scmp.eq.s32.totalorder %s18, 1
      %p159 = por %p157, %p158
      %p160 = scmp.ne.s32.totalorder %s152, %s155
      %p161 = scmp.eq.s32.totalorder %s18, 0
      %p162 = por %p160, %p161
      %p163 = scmp.ne.s32.totalorder %s152, %s155
      %p164 = scmp.eq.s32.totalorder %s23, 1
      %p165 = por %p163, %p164
      %p166 = scmp.ne.s32.totalorder %s155, %s156
      %p167 = scmp.eq.s32.totalorder %s23, 0
      %p168 = por %p166, %p167
      %p169 = scmp.ne.s32.totalorder %s155, %s156
      %p170 = scmp.eq.s32.totalorder %s24, 1
      %p171 = por %p169, %p170
      %p173 = scmp.ne.s32.totalorder %s156, %s172
      %p174 = scmp.eq.s32.totalorder %s24, 0
      %p175 = por %p173, %p174
      %p176 = scmp.le.s32.totalorder 1, %s18
      %p177 = scmp.lt.s32.totalorder %s18, 3
      %p178 = pnand %p176, %p177
      %p179 = pneg %p178
      // Predicated region
      $region9: #{tpu_custom_call.1} parent=5 // pred_check
        _
      $region10: #{tpu_custom_call.1} parent=5 // pred_check_branch
        %181 = sbr.rel (%p178) target = $region12
      $region11: #{tpu_custom_call.1} parent=5 // pred_region
        %s182 = ssub.s32 %s18, 1
        // Predicated region
        $region13: #{tpu_custom_call.1} parent=11 // pred_check
          %p183 = pneg %p93
        $region14: #{tpu_custom_call.1} parent=11 // pred_check_branch
          %185 = sbr.rel (%p183) target = $region16
        $region15: #{tpu_custom_call.1} parent=11 // pred_region
          %s186 = smul.u32 16, %s30
          %s188 = ssub.s32 1024, 1024
          %189 = vsyncadd [#allocation8], %s188
          %s190 = sadd.s32 %s29, %s186
          %s191 = smul.addr %s190, 64
          %s192 = scalar_lea.hbm %s1, %s191
          %s193 = sshll.u32 [#allocation7], 4
          %s194 = int_to_ptr.vmem [resolvable:$true] %s193
          %199 = dma.hbm_to_vmem [thread:$0]  %s192, 1024, %s194, [#allocation8], 64, 64, 4
        $region16: #{tpu_custom_call.1} parent=11 // pred_fallthru
          _
        // Predicated region
        $region17: #{tpu_custom_call.1} parent=11 // pred_check
          %p200 = pneg %p119
        $region18: #{tpu_custom_call.1} parent=11 // pred_check_branch
          %202 = sbr.rel (%p200) target = $region20
        $region19: #{tpu_custom_call.1} parent=11 // pred_region
          %p203 = scmp.lt.s32.totalorder %s29, 0
          %s204 = scalar_select %p203, %s29, 0
          %s205 = scalar_lea.vmem %s2, %s204
        $region20: #{tpu_custom_call.1} parent=11 // pred_fallthru
          _
        // Predicated region
        $region21: #{tpu_custom_call.1} parent=11 // pred_check
          %p206 = pneg %p140
        $region22: #{tpu_custom_call.1} parent=11 // pred_check_branch
          %208 = sbr.rel (%p206) target = $region24
        $region23: #{tpu_custom_call.1} parent=11 // pred_region
          _
        $region24: #{tpu_custom_call.1} parent=11 // pred_fallthru
          _
      $region12: #{tpu_custom_call.1} parent=5 // pred_fallthru
        _
      %p209 = scmp.lt.s32.totalorder %s18, 2
      // Predicated region
      $region25: #{tpu_custom_call.1} parent=5 // pred_check
        %p210 = pneg %p209
      $region26: #{tpu_custom_call.1} parent=5 // pred_check_branch
        %212 = sbr.rel (%p210) target = $region28
      $region27: #{tpu_custom_call.1} parent=5 // pred_region
        // Predicated region
        $region29: #{tpu_custom_call.1} parent=27 // pred_check
          %p213 = pneg %p59
        $region30: #{tpu_custom_call.1} parent=27 // pred_check_branch
          %215 = sbr.rel (%p213) target = $region32
        $region31: #{tpu_custom_call.1} parent=27 // pred_region
          %s216 = sand.u32 %s49, 1
          %s217 = scalar_lea.sflag [#allocation5], %s216
          %s218 = sand.u32 %s49, 1
          %s219 = smul.addr %s218, 8
          %s220 = scalar_lea.vmem [#allocation4], %s219
          %s222 = ssub.s32 128, 128
          %223 = vsyncadd %s217, %s222
          %s224 = sadd.s32 %s27, %s25
          %s225 = smul.addr %s224, 128
          %s226 = scalar_lea.hbm %s0, %s225
          %s228 = sshll.u32 %s220, 4
          %s229 = int_to_ptr.vmem [resolvable:$true] %s228
          %231 = dma.hbm_to_vmem [thread:$0]  %s226, 128, %s229, %s217
        $region32: #{tpu_custom_call.1} parent=27 // pred_fallthru
          _
      $region28: #{tpu_custom_call.1} parent=5 // pred_fallthru
        _
      %p232 = scmp.le.s32.totalorder 1, %s18
      %p233 = scmp.lt.s32.totalorder %s18, 3
      %p234 = pnand %p232, %p233
      %p235 = pneg %p234
      // Predicated region
      $region33: #{tpu_custom_call.1} parent=5 // pred_check
        _
      $region34: #{tpu_custom_call.1} parent=5 // pred_check_branch
        %237 = sbr.rel (%p234) target = $region36
      $region35: #{tpu_custom_call.1} parent=5 // pred_region
        %s238 = ssub.s32 %s18, 1
        %s239 = sand.u32 %s52, 1
        %s240 = scalar_lea.sflag [#allocation5], %s239
        %s241 = sand.u32 %s52, 1
        %s242 = smul.addr %s241, 8
        %s243 = scalar_lea.vmem [#allocation4], %s242
        // Predicated region
        $region37: #{tpu_custom_call.1} parent=35 // pred_check
          %p244 = pneg %p65
        $region38: #{tpu_custom_call.1} parent=35 // pred_check_branch
          %246 = sbr.rel (%p244) target = $region40
        $region39: #{tpu_custom_call.1} parent=35 // pred_region
          %247 = dma.done %s240, 128
        $region40: #{tpu_custom_call.1} parent=35 // pred_fallthru
          _
        // Predicated region
        $region41: #{tpu_custom_call.1} parent=35 // pred_check
          %p248 = pneg %p93
        $region42: #{tpu_custom_call.1} parent=35 // pred_check_branch
          %250 = sbr.rel (%p248) target = $region44
        $region43: #{tpu_custom_call.1} parent=35 // pred_region
          %251 = dma.done [#allocation8], 1024
        $region44: #{tpu_custom_call.1} parent=35 // pred_fallthru
          _
        %s252 = sand.u32 %s52, 1
        %s253 = scalar_lea.sflag [#allocation5], %s252
        %s254 = sand.u32 %s52, 1
        %s255 = smul.addr %s254, 8
        %s256 = scalar_lea.vmem [#allocation4], %s255
        %p257 = pneg %p65
        %p258 = pneg %p62
        %p259 = pneg %p93
        %p260 = pneg %p90
        %p261 = scmp.lt.s32.totalorder %s29, 0
        %s262 = scalar_select %p261, %s29, 0
        %s263 = scalar_lea.vmem %s2, %s262
        %p264 = pneg %p119
        %p265 = pneg %p116
        %p266 = pneg %p140
        %p267 = pneg %p137
        %p268 = pneg %p168
        %p269 = pneg %p165
        %s270 = sand.u32 %s155, 1
        %s271 = scalar_lea.sflag [#allocation6], %s270
        %s272 = sand.u32 %s155, 1
        %s273 = smul.addr %s272, 8
        %s274 = scalar_lea.vmem [#allocation9], %s273
        %s275 = smul.u32 16, %s30
        %p276 = scmp.lt.s32.totalorder %s29, 0
        %s277 = scalar_select %p276, %s29, 0
        %s278 = scalar_lea.vmem %s2, %s277
        %p280 = scmp.eq.s32.totalorder %s30, 0
        // Predicated region
        $region45: #{tpu_custom_call.1} parent=35 // pred_check
          %p281 = pneg %p280
        $region46: #{tpu_custom_call.1} parent=35 // pred_check_branch
          %283 = sbr.rel (%p281) target = $region48
        $region47: #{tpu_custom_call.1} parent=35 // pred_region
          %284 = vst [vmem:[#allocation2] sm:$0xff] 0.0
        $region48: #{tpu_custom_call.1} parent=35 // pred_fallthru
          _
        %v285 = vld [vmem:[#allocation2] sm:$0xff]
        %v286 = vld [vmem:[%s243] sm:$0xff]
        %v287 = vpack.c.bf16 %v286, %v286
        %v288 = vld [vmem:[#allocation7] sm:$0xf]
        %v289 = vld [vmem:[#allocation7 + $0x4] sm:$0xf]
        %v290 = vld [vmem:[#allocation7 + $0x8] sm:$0xf]
        %v291 = vld [vmem:[#allocation7 + $0xc] sm:$0xf]
        %v292 = vld [vmem:[#allocation7 + $0x10] sm:$0xf]
        %v293 = vld [vmem:[#allocation7 + $0x14] sm:$0xf]
        %v294 = vld [vmem:[#allocation7 + $0x18] sm:$0xf]
        %v295 = vld [vmem:[#allocation7 + $0x1c] sm:$0xf]
        %v296 = vld [vmem:[#allocation7 + $0x20] sm:$0xf]
        %v297 = vld [vmem:[#allocation7 + $0x24] sm:$0xf]
        %v298 = vld [vmem:[#allocation7 + $0x28] sm:$0xf]
        %v299 = vld [vmem:[#allocation7 + $0x2c] sm:$0xf]
        %v300 = vld [vmem:[#allocation7 + $0x30] sm:$0xf]
        %v301 = vld [vmem:[#allocation7 + $0x34] sm:$0xf]
        %v302 = vld [vmem:[#allocation7 + $0x38] sm:$0xf]
        %v303 = vld [vmem:[#allocation7 + $0x3c] sm:$0xf]
        %v320 = vunpack.c.l.b16 %v288
        %v321 = vunpack.c.l.b16 %v289
        %v322 = vunpack.c.l.b16 %v290
        %v323 = vunpack.c.l.b16 %v291
        %v324 = vunpack.c.l.b16 %v292
        %v325 = vunpack.c.l.b16 %v293
        %v326 = vunpack.c.l.b16 %v294
        %v327 = vunpack.c.l.b16 %v295
        %v328 = vunpack.c.l.b16 %v296
        %v329 = vunpack.c.l.b16 %v297
        %v330 = vunpack.c.l.b16 %v298
        %v331 = vunpack.c.l.b16 %v299
        %v332 = vunpack.c.l.b16 %v300
        %v333 = vunpack.c.l.b16 %v301
        %v334 = vunpack.c.l.b16 %v302
        %v335 = vunpack.c.l.b16 %v303
        %v336 = vpack.c.b16 %v321, %v320
        %v337 = vpack.c.b16 %v323, %v322
        %v338 = vpack.c.b16 %v325, %v324
        %v339 = vpack.c.b16 %v327, %v326
        %v340 = vpack.c.b16 %v329, %v328
        %v341 = vpack.c.b16 %v331, %v330
        %v342 = vpack.c.b16 %v333, %v332
        %v343 = vpack.c.b16 %v335, %v334
        %352 = vmatprep.subr.bf16.mxu0 0
        %353 = vmatpush1.bf16.msra.mxu0 %v336
        %354 = vmatprep.subr.bf16.mxu0 0
        %355 = vmatpush1.bf16.msra.mxu0 %v337
        %356 = vmatprep.subr.bf16.mxu0 0
        %357 = vmatpush1.bf16.msra.mxu0 %v338
        %358 = vmatprep.subr.bf16.mxu0 0
        %359 = vmatpush1.bf16.msra.mxu0 %v339
        %360 = vmatprep.subr.bf16.mxu0 0
        %361 = vmatpush1.bf16.msra.mxu0 %v340
        %362 = vmatprep.subr.bf16.mxu0 0
        %363 = vmatpush1.bf16.msra.mxu0 %v341
        %364 = vmatprep.subr.bf16.mxu0 0
        %365 = vmatpush1.bf16.msra.mxu0 %v342
        %366 = vmatprep.subr.bf16.mxu0 0
        %367 = vmatpush1.bf16.msra.mxu0 %v343
        %368 = vmatprep.subr.bf16.mxu0 0
        %369 = vmatpush1.bf16.msra.mxu0 0
        %370 = vmatprep.subr.bf16.mxu0 0
        %371 = vmatpush1.bf16.msra.mxu0 0
        %372 = vmatprep.subr.bf16.mxu0 0
        %373 = vmatpush1.bf16.msra.mxu0 0
        %374 = vmatprep.subr.bf16.mxu0 0
        %375 = vmatpush1.bf16.msra.mxu0 0
        %376 = vmatprep.subr.bf16.mxu0 0
        %377 = vmatpush1.bf16.msra.mxu0 0
        %378 = vmatprep.subr.bf16.mxu0 0
        %379 = vmatpush1.bf16.msra.mxu0 0
        %380 = vmatprep.subr.bf16.mxu0 0
        %381 = vmatpush1.bf16.msra.mxu0 0
        %382 = vmatprep.subr.bf16.mxu0 0
        %383 = vmatpush1.bf16.msra.mxu0 0
        %384 = vmatprep.mubr.bf16.mxu0 0
        %385 = vmatmul.mubr.bf16.gmra.mrb[0].mxu0 %v287
        %v386 = vpop.f32.mrb[0].mxu0
        %v387 = vadd.f32 0.0, %v386
        %v388 = vpop.f32.mrb[0].mxu0
        %v389 = vpop.f32.mrb[0].mxu0
        %v390 = vpop.f32.mrb[0].mxu0
        %391 = vdwg.mxu0
        %v392 = vadd.f32 %v285, %v387
        %393 = vst [vmem:[#allocation2] sm:$0xff] %v392
        // Predicated region
        $region49: #{tpu_custom_call.1} parent=35 // pred_check
          %p394 = pneg %p280
        $region50: #{tpu_custom_call.1} parent=35 // pred_check_branch
          %396 = sbr.rel (%p394) target = $region52
        $region51: #{tpu_custom_call.1} parent=35 // pred_region
          %v397 = vld [vmem:[#allocation2] sm:$0xff]
          %v398 = vld [vmem:[%s278] sm:$0x1]
          %v400 = vlaneseq
          %v401 = vshrl.u32 %v400, 7
          %v402 = vsub.s32 0, %v401
          %v403 = vrot.slane %v398, %v402
          %v405 = vadd.f32 %v397, %v403
          %s406 = sld [smem:[#allocation3]]
          %vm407 = vcmp.ge.f32.partialorder %v405, 0.0
          %v408 = vstv %s406
          %v409 = vmul.f32 %v408, %v405
          %v410 = vsel %vm407, %v405, %v409
          %v411 = vld [vmem:[%s243] sm:$0xff]
          %v412 = vadd.f32 %v410, %v411
          %413 = vst [vmem:[%s274] sm:$0xff] %v412
        $region52: #{tpu_custom_call.1} parent=35 // pred_fallthru
          _
        %s414 = sand.u32 %s155, 1
        %s415 = scalar_lea.sflag [#allocation6], %s414
        %s416 = sand.u32 %s155, 1
        %s417 = smul.addr %s416, 8
        %s418 = scalar_lea.vmem [#allocation9], %s417
        // Predicated region
        $region53: #{tpu_custom_call.1} parent=35 // pred_check
          %p419 = pneg %p165
        $region54: #{tpu_custom_call.1} parent=35 // pred_check_branch
          %421 = sbr.rel (%p419) target = $region56
        $region55: #{tpu_custom_call.1} parent=35 // pred_region
          %s423 = ssub.s32 128, 128
          %424 = vsyncadd %s415, %s423
          %s425 = sadd.s32 %s29, %s28
          %s426 = smul.addr %s425, 128
          %s427 = scalar_lea.hbm %s4, %s426
          %s429 = sshll.u32 %s418, 4
          %s430 = int_to_ptr.vmem [resolvable:$true] %s429
          %432 = dma.vmem_to_hbm [thread:$0]  %s430, 128, %s427, %s415
        $region56: #{tpu_custom_call.1} parent=35 // pred_fallthru
          _
      $region36: #{tpu_custom_call.1} parent=5 // pred_fallthru
        _
      %p433 = scmp.le.s32.totalorder 2, %s18
      // Predicated region
      $region57: #{tpu_custom_call.1} parent=5 // pred_check
        %p434 = pneg %p433
      $region58: #{tpu_custom_call.1} parent=5 // pred_check_branch
        %436 = sbr.rel (%p434) target = $region60
      $region59: #{tpu_custom_call.1} parent=5 // pred_region
        %s437 = ssub.s32 %s18, 2
        // Predicated region
        $region61: #{tpu_custom_call.1} parent=59 // pred_check
          %p438 = pneg %p171
        $region62: #{tpu_custom_call.1} parent=59 // pred_check_branch
          %440 = sbr.rel (%p438) target = $region64
        $region63: #{tpu_custom_call.1} parent=59 // pred_region
          %s441 = sand.u32 %s156, 1
          %s442 = scalar_lea.sflag [#allocation6], %s441
          %s443 = sand.u32 %s156, 1
          %s444 = smul.addr %s443, 8
          %s445 = scalar_lea.vmem [#allocation9], %s444
          %446 = dma.done %s442, 128
        $region64: #{tpu_custom_call.1} parent=59 // pred_fallthru
          _
      $region60: #{tpu_custom_call.1} parent=5 // pred_fallthru
        _
    $region6: #{tpu_custom_call.1} parent=1 // loop_footer
      %s22 = sadd.s32 1, %s18
    $region7: #{tpu_custom_call.1} parent=1 // loop_footer_branch
      %17 = sbr.rel target = $region3
    $region8: #{tpu_custom_call.1} parent=1 // loop_exit
      _
    %447 = vsyncpa [#allocation5], 1
    %s448 = scalar_lea.sflag [#allocation5], 1
    %449 = vsyncpa %s448, 1
    %450 = vsyncpa [#allocation8], 1
    %451 = vsyncpa [#allocation6], 1
    %s452 = scalar_lea.sflag [#allocation6], 1
    %453 = vsyncpa %s452, 1

// kernel: tpu_custom_call.1
$region0: #{tpu_custom_call.1}
  #allocation0 [shape = 'u32[]', space=smem, size = 0x4, offset = 0x4, fixed_abs, tag = 'smem constant byte address 0x4 - core index']
  #allocation1 [shape = 'u32[144,128]{1,0:T(1,128)}', space=vmem, size = 0x12000, scoped, tag = 'internal scratch']
  #allocation2 [shape = 'f32[8,128]{1,0:T(8,128)}', space=vmem, size = 0x1000, scoped, tag = 'scratch operand']
  #allocation3 [shape = 'f32[1]{0:T(128)S(6)}', space=smem, size = 0x200, scoped, tag = 'scoped memory for tpu_custom_call.1']
  %s0 = inlined_call_operand.hbm [shape: f32[16,128], index: 0, kind: input, shape index: {}]
  %s1 = inlined_call_operand.hbm [shape: bf16[128,128], index: 1, kind: input, shape index: {}]
  %s2 = inlined_call_operand.vmem [shape: f32[1,128], index: 2, kind: input, shape index: {}]
  %s3 = inlined_call_operand.<no memory space> [shape: f32[1], index: 3, kind: input, shape index: {}]
  %s4 = inlined_call_operand.hbm [shape: f32[16,128], index: 4, kind: output, shape index: {}]
  %s5 = sld [smem:[#allocation0]]
  $region65: #{tpu_custom_call.1} parent=0
    _
  %s7 = ssub.s32 1, %s5
  %s8 = scalar_select 0, %s7, %s5
  %9 = sst [smem:[#allocation3]] %s3
  $region1: #{tpu_custom_call.1} parent=0
    #allocation4 [shape = 'u8[8192]{0}', space=vmem, size = 0x2000, scoped, tag = 'input window, operand 0']
    #allocation5 [shape = 's32[2]{0}', space=sflag, size = 0x8, scoped, tag = 'scoped memory for tpu_custom_call.1']
    #allocation6 [shape = 's32[2]{0}', space=sflag, size = 0x8, scoped, tag = 'scoped memory for tpu_custom_call.1']
    #allocation7 [shape = 'u8[32768]{0}', space=vmem, size = 0x8000, scoped, tag = 'input window, operand 1, single buffered']
    #allocation8 [shape = 's32[1]{0}', space=sflag, size = 0x4, scoped, tag = 'scoped memory for tpu_custom_call.1']
    #allocation9 [shape = 'u8[8192]{0}', space=vmem, size = 0x2000, scoped, tag = 'output window, operand 0']
    %10 = vsyncpa [#allocation5], 0
    %s11 = scalar_lea.sflag [#allocation5], 1
    %12 = vsyncpa %s11, 0
    %13 = vsyncpa [#allocation8], 0
    %14 = vsyncpa [#allocation6], 0
    %s15 = scalar_lea.sflag [#allocation6], 1
    %16 = vsyncpa %s15, 0
    loop: start=0, step=1, limit=4
    $region2: #{tpu_custom_call.1} parent=1 // loop_pre_header
      _
    $region3: #{tpu_custom_call.1} parent=1 // loop_header
      %s18 = sphi 0, %s22
      %p19 = scmp.ge.s32.totalorder %s18, 4
      %s25 = sphi 0, %s44
      %s26 = sphi 0, %s40
      %s27 = sphi 0, %s36
      %s28 = sphi 0, %s25
      %s29 = sphi 0, %s26
      %s30 = sphi 0, %s27
      %s31 = sphi 0, %s28
      %s32 = sphi 0, %s29
      %s33 = sphi 0, %s30
      %s49 = sphi 0, %s51
      %s52 = sphi 0, %s49
      %s53 = sphi 0, %s52
      %s69 = sphi 0, %s53
      %s77 = sphi 0, %s79
      %s80 = sphi 0, %s77
      %s81 = sphi 0, %s80
      %s97 = sphi 0, %s81
      %s103 = sphi 0, %s105
      %s106 = sphi 0, %s103
      %s107 = sphi 0, %s106
      %s123 = sphi 0, %s107
      %s127 = sphi 0, %s127
      %s129 = sphi 0, %s127
      %s130 = sphi 0, %s129
      %s144 = sphi 0, %s130
      %s152 = sphi 0, %s154
      %s155 = sphi 0, %s152
      %s156 = sphi 0, %s155
      %s172 = sphi 0, %s156
    $region4: #{tpu_custom_call.1} parent=1 // loop_header_branch
      %21 = sbr.rel (%p19) target = $region8
    $region5: #{tpu_custom_call.1} parent=1 // loop_body
      %s23 = ssub.s32 %s18, 1
      %s24 = ssub.s32 %s18, 2
      %s34 = sadd.s32 1, %s27
      %p35 = scmp.ge.s32.totalorder %s34, 1
      %s36 = scalar_select %p35, 0, %s34
      %s37 = sadd.s32 1, %s26
      %s38 = scalar_select %p35, %s37, %s26
      %p39 = scmp.ge.s32.totalorder %s38, 1
      %s40 = scalar_select %p39, 0, %s38
      %s41 = sadd.s32 1, %s25
      %s42 = scalar_select %p39, %s41, %s25
      %p43 = scmp.ge.s32.totalorder %s42, 2
      %s44 = scalar_select %p43, 0, %s42
      %s45 = ssub.s32 %s25, %s44
      %s46 = ssub.s32 %s27, %s36
      %s47 = sor.u32 %s45, %s46
      %p48 = scmp.eq.s32.totalorder %s47, 0
      %s50 = sadd.s32 %s49, 1
      %s51 = scalar_select %p48, %s49, %s50
      %p54 = pneg %p48
      %p55 = scmp.eq.s32.totalorder %s18, 1
      %p56 = por %p54, %p55
      %p57 = scmp.ne.s32.totalorder %s49, %s52
      %p58 = scmp.eq.s32.totalorder %s18, 0
      %p59 = por %p57, %p58
      %p60 = scmp.ne.s32.totalorder %s49, %s52
      %p61 = scmp.eq.s32.totalorder %s23, 1
      %p62 = por %p60, %p61
      %p63 = scmp.ne.s32.totalorder %s52, %s53
      %p64 = scmp.eq.s32.totalorder %s23, 0
      %p65 = por %p63, %p64
      %p66 = scmp.ne.s32.totalorder %s52, %s53
      %p67 = scmp.eq.s32.totalorder %s24, 1
      %p68 = por %p66, %p67
      %p70 = scmp.ne.s32.totalorder %s53, %s69
      %p71 = scmp.eq.s32.totalorder %s24, 0
      %p72 = por %p70, %p71
      %s73 = ssub.s32 %s27, %s36
      %s74 = ssub.s32 %s26, %s40
      %s75 = sor.u32 %s73, %s74
      %p76 = scmp.eq.s32.totalorder %s75, 0
      %s78 = sadd.s32 %s77, 1
      %s79 = scalar_select %p76, %s77, %s78
      %p82 = pneg %p76
      %p83 = scmp.eq.s32.totalorder %s18, 1
      %p84 = por %p82, %p83
      %p85 = scmp.ne.s32.totalorder %s77, %s80
      %p86 = scmp.eq.s32.totalorder %s18, 0
      %p87 = por %p85, %p86
      %p88 = scmp.ne.s32.totalorder %s77, %s80
      %p89 = scmp.eq.s32.totalorder %s23, 1
      %p90 = por %p88, %p89
      %p91 = scmp.ne.s32.totalorder %s80, %s81
      %p92 = scmp.eq.s32.totalorder %s23, 0
      %p93 = por %p91, %p92
      %p94 = scmp.ne.s32.totalorder %s80, %s81
      %p95 = scmp.eq.s32.totalorder %s24, 1
      %p96 = por %p94, %p95
      %p98 = scmp.ne.s32.totalorder %s81, %s97
      %p99 = scmp.eq.s32.totalorder %s24, 0
      %p100 = por %p98, %p99
      %s101 = ssub.s32 %s26, %s40
      %p102 = scmp.eq.s32.totalorder %s101, 0
      %s104 = sadd.s32 %s103, 1
      %s105 = scalar_select %p102, %s103, %s104
      %p108 = pneg %p102
      %p109 = scmp.eq.s32.totalorder %s18, 1
      %p110 = por %p108, %p109
      %p111 = scmp.ne.s32.totalorder %s103, %s106
      %p112 = scmp.eq.s32.totalorder %s18, 0
      %p113 = por %p111, %p112
      %p114 = scmp.ne.s32.totalorder %s103, %s106
      %p115 = scmp.eq.s32.totalorder %s23, 1
      %p116 = por %p114, %p115
      %p117 = scmp.ne.s32.totalorder %s106, %s107
      %p118 = scmp.eq.s32.totalorder %s23, 0
      %p119 = por %p117, %p118
      %p120 = scmp.ne.s32.totalorder %s106, %s107
      %p121 = scmp.eq.s32.totalorder %s24, 1
      %p122 = por %p120, %p121
      %p124 = scmp.ne.s32.totalorder %s107, %s123
      %p125 = scmp.eq.s32.totalorder %s24, 0
      %p126 = por %p124, %p125
      %s128 = sadd.s32 %s127, 1
      %p131 = scmp.eq.s32.totalorder %s18, 1
      %p132 = scmp.ne.s32.totalorder %s127, %s129
      %p133 = scmp.eq.s32.totalorder %s18, 0
      %p134 = por %p132, %p133
      %p135 = scmp.ne.s32.totalorder %s127, %s129
      %p136 = scmp.eq.s32.totalorder %s23, 1
      %p137 = por %p135, %p136
      %p138 = scmp.ne.s32.totalorder %s129, %s130
      %p139 = scmp.eq.s32.totalorder %s23, 0
      %p140 = por %p138, %p139
      %p141 = scmp.ne.s32.totalorder %s129, %s130
      %p142 = scmp.eq.s32.totalorder %s24, 1
      %p143 = por %p141, %p142
      %p145 = scmp.ne.s32.totalorder %s130, %s144
      %p146 = scmp.eq.s32.totalorder %s24, 0
      %p147 = por %p145, %p146
      %s148 = ssub.s32 %s25, %s44
      %s149 = ssub.s32 %s26, %s40
      %s150 = sor.u32 %s148, %s149
      %p151 = scmp.eq.s32.totalorder %s150, 0
      %s153 = sadd.s32 %s152, 1
      %s154 = scalar_select %p151, %s152, %s153
      %p157 = pneg %p151
      %p158 = scmp.eq.s32.totalorder %s18, 1
      %p159 = por %p157, %p158
      %p160 = scmp.ne.s32.totalorder %s152, %s155
      %p161 = scmp.eq.s32.totalorder %s18, 0
      %p162 = por %p160, %p161
      %p163 = scmp.ne.s32.totalorder %s152, %s155
      %p164 = scmp.eq.s32.totalorder %s23, 1
      %p165 = por %p163, %p164
      %p166 = scmp.ne.s32.totalorder %s155, %s156
      %p167 = scmp.eq.s32.totalorder %s23, 0
      %p168 = por %p166, %p167
      %p169 = scmp.ne.s32.totalorder %s155, %s156
      %p170 = scmp.eq.s32.totalorder %s24, 1
      %p171 = por %p169, %p170
      %p173 = scmp.ne.s32.totalorder %s156, %s172
      %p174 = scmp.eq.s32.totalorder %s24, 0
      %p175 = por %p173, %p174
      %p176 = scmp.le.s32.totalorder 1, %s18
      %p177 = scmp.lt.s32.totalorder %s18, 3
      %p178 = pnand %p176, %p177
      %p179 = pneg %p178
      // Predicated region
      $region9: #{tpu_custom_call.1} parent=5 // pred_check
        _
      $region10: #{tpu_custom_call.1} parent=5 // pred_check_branch
        %181 = sbr.rel (%p178) target = $region12
      $region11: #{tpu_custom_call.1} parent=5 // pred_region
        %s182 = ssub.s32 %s18, 1
        // Predicated region
        $region13: #{tpu_custom_call.1} parent=11 // pred_check
          %p183 = pneg %p93
        $region14: #{tpu_custom_call.1} parent=11 // pred_check_branch
          %185 = sbr.rel (%p183) target = $region16
        $region15: #{tpu_custom_call.1} parent=11 // pred_region
          %s186 = smul.u32 16, %s30
          %s188 = ssub.s32 1024, 1024
          %189 = vsyncadd [#allocation8], %s188
          %s190 = sadd.s32 %s29, %s186
          %s191 = smul.addr %s190, 64
          %s192 = scalar_lea.hbm %s1, %s191
          %s193 = sshll.u32 [#allocation7], 4
          %s194 = int_to_ptr.vmem [resolvable:$true] %s193
          %199 = dma.hbm_to_vmem [thread:$0]  %s192, 1024, %s194, [#allocation8], 64, 64, 4
        $region16: #{tpu_custom_call.1} parent=11 // pred_fallthru
          _
        // Predicated region
        $region17: #{tpu_custom_call.1} parent=11 // pred_check
          %p200 = pneg %p119
        $region18: #{tpu_custom_call.1} parent=11 // pred_check_branch
          %202 = sbr.rel (%p200) target = $region20
        $region19: #{tpu_custom_call.1} parent=11 // pred_region
          %p203 = scmp.lt.s32.totalorder %s29, 0
          %s204 = scalar_select %p203, %s29, 0
          %s205 = scalar_lea.vmem %s2, %s204
        $region20: #{tpu_custom_call.1} parent=11 // pred_fallthru
          _
        // Predicated region
        $region21: #{tpu_custom_call.1} parent=11 // pred_check
          %p206 = pneg %p140
        $region22: #{tpu_custom_call.1} parent=11 // pred_check_branch
          %208 = sbr.rel (%p206) target = $region24
        $region23: #{tpu_custom_call.1} parent=11 // pred_region
          _
        $region24: #{tpu_custom_call.1} parent=11 // pred_fallthru
          _
      $region12: #{tpu_custom_call.1} parent=5 // pred_fallthru
        _
      %p209 = scmp.lt.s32.totalorder %s18, 2
      // Predicated region
      $region25: #{tpu_custom_call.1} parent=5 // pred_check
        %p210 = pneg %p209
      $region26: #{tpu_custom_call.1} parent=5 // pred_check_branch
        %212 = sbr.rel (%p210) target = $region28
      $region27: #{tpu_custom_call.1} parent=5 // pred_region
        // Predicated region
        $region29: #{tpu_custom_call.1} parent=27 // pred_check
          %p213 = pneg %p59
        $region30: #{tpu_custom_call.1} parent=27 // pred_check_branch
          %215 = sbr.rel (%p213) target = $region32
        $region31: #{tpu_custom_call.1} parent=27 // pred_region
          %s216 = sand.u32 %s49, 1
          %s217 = scalar_lea.sflag [#allocation5], %s216
          %s218 = sand.u32 %s49, 1
          %s219 = smul.addr %s218, 8
          %s220 = scalar_lea.vmem [#allocation4], %s219
          %s222 = ssub.s32 128, 128
          %223 = vsyncadd %s217, %s222
          %s224 = sadd.s32 %s27, %s25
          %s225 = smul.addr %s224, 128
          %s226 = scalar_lea.hbm %s0, %s225
          %s228 = sshll.u32 %s220, 4
          %s229 = int_to_ptr.vmem [resolvable:$true] %s228
          %231 = dma.hbm_to_vmem [thread:$0]  %s226, 128, %s229, %s217
        $region32: #{tpu_custom_call.1} parent=27 // pred_fallthru
          _
      $region28: #{tpu_custom_call.1} parent=5 // pred_fallthru
        _
      %p232 = scmp.le.s32.totalorder 1, %s18
      %p233 = scmp.lt.s32.totalorder %s18, 3
      %p234 = pnand %p232, %p233
      %p235 = pneg %p234
      // Predicated region
      $region33: #{tpu_custom_call.1} parent=5 // pred_check
        _
      $region34: #{tpu_custom_call.1} parent=5 // pred_check_branch
        %237 = sbr.rel (%p234) target = $region36
      $region35: #{tpu_custom_call.1} parent=5 // pred_region
        %s238 = ssub.s32 %s18, 1
        %s239 = sand.u32 %s52, 1
        %s240 = scalar_lea.sflag [#allocation5], %s239
        %s241 = sand.u32 %s52, 1
        %s242 = smul.addr %s241, 8
        %s243 = scalar_lea.vmem [#allocation4], %s242
        // Predicated region
        $region37: #{tpu_custom_call.1} parent=35 // pred_check
          %p244 = pneg %p65
        $region38: #{tpu_custom_call.1} parent=35 // pred_check_branch
          %246 = sbr.rel (%p244) target = $region40
        $region39: #{tpu_custom_call.1} parent=35 // pred_region
          %247 = dma.done %s240, 128
        $region40: #{tpu_custom_call.1} parent=35 // pred_fallthru
          _
        // Predicated region
        $region41: #{tpu_custom_call.1} parent=35 // pred_check
          %p248 = pneg %p93
        $region42: #{tpu_custom_call.1} parent=35 // pred_check_branch
          %250 = sbr.rel (%p248) target = $region44
        $region43: #{tpu_custom_call.1} parent=35 // pred_region
          %251 = dma.done [#allocation8], 1024
        $region44: #{tpu_custom_call.1} parent=35 // pred_fallthru
          _
        %s252 = sand.u32 %s52, 1
        %s253 = scalar_lea.sflag [#allocation5], %s252
        %s254 = sand.u32 %s52, 1
        %s255 = smul.addr %s254, 8
        %s256 = scalar_lea.vmem [#allocation4], %s255
        %p257 = pneg %p65
        %p258 = pneg %p62
        %p259 = pneg %p93
        %p260 = pneg %p90
        %p261 = scmp.lt.s32.totalorder %s29, 0
        %s262 = scalar_select %p261, %s29, 0
        %s263 = scalar_lea.vmem %s2, %s262
        %p264 = pneg %p119
        %p265 = pneg %p116
        %p266 = pneg %p140
        %p267 = pneg %p137
        %p268 = pneg %p168
        %p269 = pneg %p165
        %s270 = sand.u32 %s155, 1
        %s271 = scalar_lea.sflag [#allocation6], %s270
        %s272 = sand.u32 %s155, 1
        %s273 = smul.addr %s272, 8
        %s274 = scalar_lea.vmem [#allocation9], %s273
        %s275 = smul.u32 16, %s30
        %p276 = scmp.lt.s32.totalorder %s29, 0
        %s277 = scalar_select %p276, %s29, 0
        %s278 = scalar_lea.vmem %s2, %s277
        %p280 = scmp.eq.s32.totalorder %s30, 0
        // Predicated region
        $region45: #{tpu_custom_call.1} parent=35 // pred_check
          %p281 = pneg %p280
        $region46: #{tpu_custom_call.1} parent=35 // pred_check_branch
          %283 = sbr.rel (%p281) target = $region48
        $region47: #{tpu_custom_call.1} parent=35 // pred_region
          %284 = vst [vmem:[#allocation2] sm:$0xff] 0.0
        $region48: #{tpu_custom_call.1} parent=35 // pred_fallthru
          _
        %v285 = vld [vmem:[#allocation2] sm:$0xff]
        %v286 = vld [vmem:[%s243] sm:$0xff]
        %v287 = vpack.c.bf16 %v286, %v286
        %v288 = vld [vmem:[#allocation7] sm:$0xf]
        %v289 = vld [vmem:[#allocation7 + $0x4] sm:$0xf]
        %v290 = vld [vmem:[#allocation7 + $0x8] sm:$0xf]
        %v291 = vld [vmem:[#allocation7 + $0xc] sm:$0xf]
        %v292 = vld [vmem:[#allocation7 + $0x10] sm:$0xf]
        %v293 = vld [vmem:[#allocation7 + $0x14] sm:$0xf]
        %v294 = vld [vmem:[#allocation7 + $0x18] sm:$0xf]
        %v295 = vld [vmem:[#allocation7 + $0x1c] sm:$0xf]
        %v296 = vld [vmem:[#allocation7 + $0x20] sm:$0xf]
        %v297 = vld [vmem:[#allocation7 + $0x24] sm:$0xf]
        %v298 = vld [vmem:[#allocation7 + $0x28] sm:$0xf]
        %v299 = vld [vmem:[#allocation7 + $0x2c] sm:$0xf]
        %v300 = vld [vmem:[#allocation7 + $0x30] sm:$0xf]
        %v301 = vld [vmem:[#allocation7 + $0x34] sm:$0xf]
        %v302 = vld [vmem:[#allocation7 + $0x38] sm:$0xf]
        %v303 = vld [vmem:[#allocation7 + $0x3c] sm:$0xf]
        %v320 = vunpack.c.l.b16 %v288
        %v321 = vunpack.c.l.b16 %v289
        %v322 = vunpack.c.l.b16 %v290
        %v323 = vunpack.c.l.b16 %v291
        %v324 = vunpack.c.l.b16 %v292
        %v325 = vunpack.c.l.b16 %v293
        %v326 = vunpack.c.l.b16 %v294
        %v327 = vunpack.c.l.b16 %v295
        %v328 = vunpack.c.l.b16 %v296
        %v329 = vunpack.c.l.b16 %v297
        %v330 = vunpack.c.l.b16 %v298
        %v331 = vunpack.c.l.b16 %v299
        %v332 = vunpack.c.l.b16 %v300
        %v333 = vunpack.c.l.b16 %v301
        %v334 = vunpack.c.l.b16 %v302
        %v335 = vunpack.c.l.b16 %v303
        %v336 = vpack.c.b16 %v321, %v320
        %v337 = vpack.c.b16 %v323, %v322
        %v338 = vpack.c.b16 %v325, %v324
        %v339 = vpack.c.b16 %v327, %v326
        %v340 = vpack.c.b16 %v329, %v328
        %v341 = vpack.c.b16 %v331, %v330
        %v342 = vpack.c.b16 %v333, %v332
        %v343 = vpack.c.b16 %v335, %v334
        %352 = vmatprep.subr.bf16.mxu0 0
        %353 = vmatpush1.bf16.msra.mxu0 %v336
        %354 = vmatprep.subr.bf16.mxu0 0
        %355 = vmatpush1.bf16.msra.mxu0 %v337
        %356 = vmatprep.subr.bf16.mxu0 0
        %357 = vmatpush1.bf16.msra.mxu0 %v338
        %358 = vmatprep.subr.bf16.mxu0 0
        %359 = vmatpush1.bf16.msra.mxu0 %v339
        %360 = vmatprep.subr.bf16.mxu0 0
        %361 = vmatpush1.bf16.msra.mxu0 %v340
        %362 = vmatprep.subr.bf16.mxu0 0
        %363 = vmatpush1.bf16.msra.mxu0 %v341
        %364 = vmatprep.subr.bf16.mxu0 0
        %365 = vmatpush1.bf16.msra.mxu0 %v342
        %366 = vmatprep.subr.bf16.mxu0 0
        %367 = vmatpush1.bf16.msra.mxu0 %v343
        %368 = vmatprep.subr.bf16.mxu0 0
        %369 = vmatpush1.bf16.msra.mxu0 0
        %370 = vmatprep.subr.bf16.mxu0 0
        %371 = vmatpush1.bf16.msra.mxu0 0
        %372 = vmatprep.subr.bf16.mxu0 0
        %373 = vmatpush1.bf16.msra.mxu0 0
        %374 = vmatprep.subr.bf16.mxu0 0
        %375 = vmatpush1.bf16.msra.mxu0 0
        %376 = vmatprep.subr.bf16.mxu0 0
        %377 = vmatpush1.bf16.msra.mxu0 0
        %378 = vmatprep.subr.bf16.mxu0 0
        %379 = vmatpush1.bf16.msra.mxu0 0
        %380 = vmatprep.subr.bf16.mxu0 0
        %381 = vmatpush1.bf16.msra.mxu0 0
        %382 = vmatprep.subr.bf16.mxu0 0
        %383 = vmatpush1.bf16.msra.mxu0 0
        %384 = vmatprep.mubr.bf16.mxu0 0
        %385 = vmatmul.mubr.bf16.gmra.mrb[0].mxu0 %v287
        %v386 = vpop.f32.mrb[0].mxu0
        %v387 = vadd.f32 0.0, %v386
        %v388 = vpop.f32.mrb[0].mxu0
        %v389 = vpop.f32.mrb[0].mxu0
        %v390 = vpop.f32.mrb[0].mxu0
        %391 = vdwg.mxu0
        %v392 = vadd.f32 %v285, %v387
        %393 = vst [vmem:[#allocation2] sm:$0xff] %v392
        // Predicated region
        $region49: #{tpu_custom_call.1} parent=35 // pred_check
          %p394 = pneg %p280
        $region50: #{tpu_custom_call.1} parent=35 // pred_check_branch
          %396 = sbr.rel (%p394) target = $region52
        $region51: #{tpu_custom_call.1} parent=35 // pred_region
          %v397 = vld [vmem:[#allocation2] sm:$0xff]
          %v398 = vld [vmem:[%s278] sm:$0x1]
          %v400 = vlaneseq
          %v401 = vshrl.u32 %v400, 7
          %v402 = vsub.s32 0, %v401
          %v403 = vrot.slane %v398, %v402
          %v405 = vadd.f32 %v397, %v403
          %s406 = sld [smem:[#allocation3]]
          %vm407 = vcmp.ge.f32.partialorder %v405, 0.0
          %v408 = vstv %s406
          %v409 = vmul.f32 %v408, %v405
          %v410 = vsel %vm407, %v405, %v409
          %v411 = vld [vmem:[%s243] sm:$0xff]
          %v412 = vadd.f32 %v410, %v411
          %413 = vst [vmem:[%s274] sm:$0xff] %v412
        $region52: #{tpu_custom_call.1} parent=35 // pred_fallthru
          _
        %s414 = sand.u32 %s155, 1
        %s415 = scalar_lea.sflag [#allocation6], %s414
        %s416 = sand.u32 %s155, 1
        %s417 = smul.addr %s416, 8
        %s418 = scalar_lea.vmem [#allocation9], %s417
        // Predicated region
        $region53: #{tpu_custom_call.1} parent=35 // pred_check
          %p419 = pneg %p165
        $region54: #{tpu_custom_call.1} parent=35 // pred_check_branch
          %421 = sbr.rel (%p419) target = $region56
        $region55: #{tpu_custom_call.1} parent=35 // pred_region
          %s423 = ssub.s32 128, 128
          %424 = vsyncadd %s415, %s423
          %s425 = sadd.s32 %s29, %s28
          %s426 = smul.addr %s425, 128
          %s427 = scalar_lea.hbm %s4, %s426
          %s429 = sshll.u32 %s418, 4
          %s430 = int_to_ptr.vmem [resolvable:$true] %s429
          %432 = dma.vmem_to_hbm [thread:$0]  %s430, 128, %s427, %s415
        $region56: #{tpu_custom_call.1} parent=35 // pred_fallthru
          _
      $region36: #{tpu_custom_call.1} parent=5 // pred_fallthru
        _
      %p433 = scmp.le.s32.totalorder 2, %s18
      // Predicated region
      $region57: #{tpu_custom_call.1} parent=5 // pred_check
        %p434 = pneg %p433
      $region58: #{tpu_custom_call.1} parent=5 // pred_check_branch
        %436 = sbr.rel (%p434) target = $region60
      $region59: #{tpu_custom_call.1} parent=5 // pred_region
        %s437 = ssub.s32 %s18, 2
        // Predicated region
        $region61: #{tpu_custom_call.1} parent=59 // pred_check
          %p438 = pneg %p171
        $region62: #{tpu_custom_call.1} parent=59 // pred_check_branch
          %440 = sbr.rel (%p438) target = $region64
        $region63: #{tpu_custom_call.1} parent=59 // pred_region
          %s441 = sand.u32 %s156, 1
          %s442 = scalar_lea.sflag [#allocation6], %s441
          %s443 = sand.u32 %s156, 1
          %s444 = smul.addr %s443, 8
          %s445 = scalar_lea.vmem [#allocation9], %s444
          %446 = dma.done %s442, 128
        $region64: #{tpu_custom_call.1} parent=59 // pred_fallthru
          _
      $region60: #{tpu_custom_call.1} parent=5 // pred_fallthru
        _
    $region6: #{tpu_custom_call.1} parent=1 // loop_footer
      %s22 = sadd.s32 1, %s18
    $region7: #{tpu_custom_call.1} parent=1 // loop_footer_branch
      %17 = sbr.rel target = $region3
    $region8: #{tpu_custom_call.1} parent=1 // loop_exit
      _
    %447 = vsyncpa [#allocation5], 1
    %s448 = scalar_lea.sflag [#allocation5], 1
    %449 = vsyncpa %s448, 1
    %450 = vsyncpa [#allocation8], 1
    %451 = vsyncpa [#allocation6], 1
    %s452 = scalar_lea.sflag [#allocation6], 1
    %453 = vsyncpa %s452, 1

</llo_original>
